<compile_context>
chip_gen: v5e
topology: v5e:2x2
jax: 0.10.0
libtpu: 0.0.40
codegen_flags: <defaults>
</compile_context>

<pallas_src>
import numpy as np
import jax
import jax.numpy as jnp
from jax.experimental import pallas as pl
from jax.experimental.pallas import tpu as pltpu

# ---------------- hyper-parameters ----------------
B = 2          # batch
H = W = 16     # spatial
HW = H * W
C_IN = 2       # (ct, cbct)
T_STEPS = 100  # diffusion steps
BETA_1 = 1e-4
BETA_T = 0.02
MEAN = 0.5
STD = 0.5
INV_STD = 1.0 / STD
T_DIM = 8      # time-embedding dim
F_DIM = 8      # stft feature dim
HID = 32       # synthetic model hidden dim


# ---------------- Pallas kernel ----------------
def trainer_kernel(x_ref, coef_ref, cols_ref, w2blk_ref, loss_ref):
    """Single-invocation kernel; whole batch resident in VMEM.

    x_ref     : (C_IN*B, HW)  f32 VMEM -- rows [ct_0..ct_{B-1}, cbct_0..cbct_{B-1}]
    coef_ref  : (2*B,)        f32 SMEM -- per-sample folded (coef_a, coef_b)
    cols_ref  : (HID, C_IN+B) f32 VMEM -- packed [W1^T | cond^T] columns
    w2blk_ref : (B, B*HID)    f32 VMEM -- block-diagonal output-projection rows
    loss_ref  : (1, 1)        f32 SMEM -- scalar sum-MSE loss
    """
    ct_all = x_ref[0:B, :]             # (B, HW)   noisy-input channel
    cbct_all = x_ref[B:2 * B, :]       # (B, HW)   conditioning channel
    noise_all = (ct_all - MEAN) * INV_STD            # (B, HW), vectorized over batch

    w1_ct = cols_ref[:, 0:1]           # (HID, 1) = W1[0, :]
    w1_cb = cols_ref[:, 1:2]           # (HID, 1) = W1[1, :]

    hs = []
    for b in range(B):                 # B = 2, static unroll (no grid, no DMA per step)
        coef_a = coef_ref[2 * b]
        coef_b = coef_ref[2 * b + 1]
        # x_t noisy channel: sqrt_ab*ct + sqrt_1m_ab*noise folded to a*ct + b
        xt0 = coef_a * ct_all[b:b + 1, :] + coef_b                     # (1, HW)
        cond_b = cols_ref[:, C_IN + b:C_IN + b + 1]                    # (HID, 1)
        # synthetic per-pixel MLP: HID on sublanes x HW on lanes (full-lane vregs)
        hs.append(jnp.maximum(
            w1_ct * xt0 + w1_cb * cbct_all[b:b + 1, :] + cond_b, 0.0))  # (HID, HW)
    h_all = jnp.concatenate(hs, axis=0)                                # (B*HID, HW)

    # All per-sample HID->1 projections fused into one block-diagonal MXU matmul.
    pred = jnp.dot(w2blk_ref[...], h_all,
                   precision=jax.lax.Precision.HIGHEST,
                   preferred_element_type=jnp.float32)                 # (B, HW)

    err = pred - noise_all
    loss_ref[0, 0] = jnp.sum(err * err)


def diffusion_trainer_loss(x0_nchw, stft_features, t, buffers, params):
    """x0_nchw: (B, 2, H, W) f32; stft_features: (B, F_DIM) f32; t: (B,) i32."""
    sqrt_ab, sqrt_1m_ab = buffers          # (T,), (T,) f32
    W1, b1, Wt, Ws, W2 = params

    # glue: per-sample schedule scalars folded so xt0 = coef_a*ct + coef_b
    sab_t = sqrt_ab[t]                     # (B,)
    somab_t = sqrt_1m_ab[t]                # (B,)
    coef_a = sab_t + somab_t * INV_STD
    coef_b = -somab_t * (MEAN * INV_STD)
    coefs = jnp.stack([coef_a, coef_b], axis=-1).reshape(2 * B)   # (2B,) -> 1-D SMEM

    # glue: time embedding + conditioning projection (hoisted; one tiny
    # (B,16)x(16,HID) dot producing per-sample HID columns)
    half = T_DIM // 2
    freqs = jnp.exp(-jnp.log(10000.0) * jnp.arange(half, dtype=jnp.float32) / half)
    args = t.astype(jnp.float32)[:, None] * freqs[None, :]
    temb = jnp.concatenate([jnp.sin(args), jnp.cos(args)], axis=-1)   # (B, T_DIM)
    cond = temb @ Wt + stft_features @ Ws + b1                        # (B, HID)

    # glue: NCHW -> channel-major (C_IN*B, HW) so pixels land on the lane axis
    # and ct / cbct slabs are contiguous sublane ranges
    x2d = jnp.transpose(x0_nchw.reshape(B, C_IN, HW), (1, 0, 2)).reshape(C_IN * B, HW)

    # pack all (HID, 1)-column operands into one slab -> single DMA descriptor
    cols = jnp.concatenate([W1.T, cond.T], axis=1)            # (HID, C_IN + B)
    # block-diagonal output projection: one MXU matmul covers every sample
    w2blk = jnp.kron(jnp.eye(B, dtype=jnp.float32), W2)       # (B, B*HID)

    grid_spec = pltpu.PrefetchScalarGridSpec(
        num_scalar_prefetch=0,
        grid=(1,),                                             # whole problem in one step
        in_specs=[
            pl.BlockSpec((C_IN * B, HW), lambda i: (0, 0)),    # pixels, whole batch
            pl.BlockSpec(memory_space=pltpu.SMEM),             # coefs (2B,)
            pl.BlockSpec((HID, C_IN + B), lambda i: (0, 0)),   # packed columns
            pl.BlockSpec((B, B * HID), lambda i: (0, 0)),      # block-diag W2
        ],
        out_specs=pl.BlockSpec(memory_space=pltpu.SMEM),       # scalar loss in SMEM
    )

    loss = pl.pallas_call(
        trainer_kernel,
        out_shape=jax.ShapeDtypeStruct((1, 1), jnp.float32),
        grid_spec=grid_spec,
        compiler_params=pltpu.CompilerParams(
            dimension_semantics=("arbitrary",)),
    )(x2d, coefs, cols, w2blk)
    return loss[0, 0]


# ---------------- pure-JAX reference ----------------
def reference_loss(x0_nchw, stft_features, t, buffers, params):
    sqrt_ab, sqrt_1m_ab = buffers
    W1, b1, Wt, Ws, W2 = params
    ct = x0_nchw[:, 0:1]
    cbct = x0_nchw[:, 1:2]
    noise = (ct - MEAN) / STD
    sab = sqrt_ab[t].reshape(B, 1, 1, 1)
    somab = sqrt_1m_ab[t].reshape(B, 1, 1, 1)
    xt = sab * ct + somab * noise
    x_t = jnp.concatenate([xt, cbct], axis=1)                 # (B,2,H,W)

    half = T_DIM // 2
    freqs = jnp.exp(-jnp.log(10000.0) * jnp.arange(half, dtype=jnp.float32) / half)
    args = t.astype(jnp.float32)[:, None] * freqs[None, :]
    temb = jnp.concatenate([jnp.sin(args), jnp.cos(args)], axis=-1)

    cond = temb @ Wt + stft_features @ Ws + b1                # (B, HID)
    xflat = jnp.transpose(x_t, (0, 2, 3, 1)).reshape(B, HW, C_IN)
    h = jnp.maximum(xflat @ W1 + cond[:, None, :], 0.0)       # (B, HW, HID)
    pred = jnp.sum(h * W2[None], axis=-1, keepdims=True)      # (B, HW, 1)
    nflat = jnp.transpose(noise, (0, 2, 3, 1)).reshape(B, HW, 1)
    return jnp.sum((pred - nflat) ** 2)


if __name__ == "__main__":
    # ---- diffusion buffers (double precision as in the module, then .float()) ----
    betas64 = np.linspace(BETA_1, BETA_T, T_STEPS, dtype=np.float64)
    alphas_bar64 = np.cumprod(1.0 - betas64)
    sqrt_ab = jnp.asarray(np.sqrt(alphas_bar64), dtype=jnp.float32)
    sqrt_1m_ab = jnp.asarray(np.sqrt(1.0 - alphas_bar64), dtype=jnp.float32)

    # ---- deterministic synthetic model parameters ----
    key = jax.random.PRNGKey(0)
    k_x, k_s, k_t, k1, k2, k3, k4, k5 = jax.random.split(key, 8)
    W1 = 0.1 * jax.random.normal(k1, (C_IN, HID), dtype=jnp.float32)
    b1 = 0.1 * jax.random.normal(k2, (1, HID), dtype=jnp.float32)
    Wt = 0.1 * jax.random.normal(k3, (T_DIM, HID), dtype=jnp.float32)
    Ws = 0.1 * jax.random.normal(k4, (F_DIM, HID), dtype=jnp.float32)
    W2 = 0.1 * jax.random.normal(k5, (1, HID), dtype=jnp.float32)
    params = (W1, b1, Wt, Ws, W2)
    buffers = (sqrt_ab, sqrt_1m_ab)

    # ---- deterministic example inputs ----
    x0 = jax.random.normal(k_x, (B, 2, H, W), dtype=jnp.float32)
    stft = jax.random.normal(k_s, (B, F_DIM), dtype=jnp.float32)
    # torch.randint(T, (B,)) equivalent (kernel is deterministic given t)
    t = jax.random.randint(k_t, (B,), 0, T_STEPS, dtype=jnp.int32)

    loss = diffusion_trainer_loss(x0, stft, t, buffers, params)
    loss = jax.block_until_ready(loss)

    ref = jax.block_until_ready(reference_loss(x0, stft, t, buffers, params))
    if not np.allclose(np.asarray(loss), np.asarray(ref), rtol=1e-3, atol=1e-3):
        raise AssertionError(f"mismatch: pallas={loss} ref={ref}")

    print("KERNEL_OK")
</pallas_src>

<mosaic_0001>
module attributes {stable_mosaic.version = 11 : i64} {
  func.func @trainer_kernel(%arg0: i32, %arg1: memref<4x256xf32, #tpu.memory_space<vmem>>, %arg2: memref<4xf32, #tpu.memory_space<smem>>, %arg3: memref<32x4xf32, #tpu.memory_space<vmem>>, %arg4: memref<2x64xf32, #tpu.memory_space<vmem>>, %arg5: memref<1x1xf32, #tpu.memory_space<smem>>) attributes {dimension_semantics = [#tpu.dimension_semantics<arbitrary>], iteration_bounds = array<i64: 1>, scalar_prefetch = 0 : i64, scratch_operands = 0 : i64, tpu.core_type = #tpu.core_type<tc>, window_params = [{pipeline_mode = #tpu.pipeline_mode<synchronous>, transform_indices = @transform_0, window_bounds = array<i64: 4, 256>}, {transform_indices = @transform_1, window_bounds = array<i64: 4>}, {pipeline_mode = #tpu.pipeline_mode<synchronous>, transform_indices = @transform_2, window_bounds = array<i64: 32, 4>}, {pipeline_mode = #tpu.pipeline_mode<synchronous>, transform_indices = @transform_3, window_bounds = array<i64: 2, 64>}, {transform_indices = @transform_4, window_bounds = array<i64: 1, 1>}]} {
    %c0 = arith.constant 0 : index
    %c0_0 = arith.constant 0 : index
    %0 = vector.load %arg1[%c0, %c0_0] : memref<4x256xf32, #tpu.memory_space<vmem>>, vector<2x256xf32>
    %c2 = arith.constant 2 : index
    %c0_1 = arith.constant 0 : index
    %1 = vector.load %arg1[%c2, %c0_1] : memref<4x256xf32, #tpu.memory_space<vmem>>, vector<2x256xf32>
    %cst = arith.constant 5.000000e-01 : f32
    %2 = vector.broadcast %cst : f32 to vector<2x256xf32>
    %3 = arith.subf %0, %2 : vector<2x256xf32>
    %cst_2 = arith.constant 2.000000e+00 : f32
    %4 = vector.broadcast %cst_2 : f32 to vector<2x256xf32>
    %5 = arith.mulf %3, %4 : vector<2x256xf32>
    %c0_3 = arith.constant 0 : index
    %c0_4 = arith.constant 0 : index
    %6 = vector.load %arg3[%c0_3, %c0_4] : memref<32x4xf32, #tpu.memory_space<vmem>>, vector<32x1xf32>
    %c0_5 = arith.constant 0 : index
    %c1 = arith.constant 1 : index
    %7 = vector.load %arg3[%c0_5, %c1] : memref<32x4xf32, #tpu.memory_space<vmem>>, vector<32x1xf32>
    %c0_6 = arith.constant 0 : index
    %8 = memref.load %arg2[%c0_6] : memref<4xf32, #tpu.memory_space<smem>>
    %c1_7 = arith.constant 1 : index
    %9 = memref.load %arg2[%c1_7] : memref<4xf32, #tpu.memory_space<smem>>
    %10 = vector.extract_strided_slice %0 {offsets = [0, 0], sizes = [1, 256], strides = [1, 1]} : vector<2x256xf32> to vector<1x256xf32>
    %11 = vector.broadcast %8 : f32 to vector<1x256xf32>
    %12 = arith.mulf %11, %10 : vector<1x256xf32>
    %13 = vector.broadcast %9 : f32 to vector<1x256xf32>
    %14 = arith.addf %12, %13 : vector<1x256xf32>
    %c0_8 = arith.constant 0 : index
    %c2_9 = arith.constant 2 : index
    %15 = vector.load %arg3[%c0_8, %c2_9] : memref<32x4xf32, #tpu.memory_space<vmem>>, vector<32x1xf32>
    %16 = vector.broadcast %6 : vector<32x1xf32> to vector<32x256xf32>
    %17 = vector.broadcast %14 : vector<1x256xf32> to vector<32x256xf32>
    %18 = arith.mulf %16, %17 : vector<32x256xf32>
    %19 = vector.extract_strided_slice %1 {offsets = [0, 0], sizes = [1, 256], strides = [1, 1]} : vector<2x256xf32> to vector<1x256xf32>
    %20 = vector.broadcast %7 : vector<32x1xf32> to vector<32x256xf32>
    %21 = vector.broadcast %19 : vector<1x256xf32> to vector<32x256xf32>
    %22 = arith.mulf %20, %21 : vector<32x256xf32>
    %23 = arith.addf %18, %22 : vector<32x256xf32>
    %24 = vector.broadcast %15 : vector<32x1xf32> to vector<32x256xf32>
    %25 = arith.addf %23, %24 : vector<32x256xf32>
    %cst_10 = arith.constant 0.000000e+00 : f32
    %26 = vector.broadcast %cst_10 : f32 to vector<32x256xf32>
    %27 = arith.maximumf %25, %26 : vector<32x256xf32>
    %c2_11 = arith.constant 2 : index
    %28 = memref.load %arg2[%c2_11] : memref<4xf32, #tpu.memory_space<smem>>
    %c3 = arith.constant 3 : index
    %29 = memref.load %arg2[%c3] : memref<4xf32, #tpu.memory_space<smem>>
    %30 = vector.extract_strided_slice %0 {offsets = [1, 0], sizes = [1, 256], strides = [1, 1]} : vector<2x256xf32> to vector<1x256xf32>
    %31 = vector.broadcast %28 : f32 to vector<1x256xf32>
    %32 = arith.mulf %31, %30 : vector<1x256xf32>
    %33 = vector.broadcast %29 : f32 to vector<1x256xf32>
    %34 = arith.addf %32, %33 : vector<1x256xf32>
    %c0_12 = arith.constant 0 : index
    %c3_13 = arith.constant 3 : index
    %35 = vector.load %arg3[%c0_12, %c3_13] : memref<32x4xf32, #tpu.memory_space<vmem>>, vector<32x1xf32>
    %36 = vector.broadcast %6 : vector<32x1xf32> to vector<32x256xf32>
    %37 = vector.broadcast %34 : vector<1x256xf32> to vector<32x256xf32>
    %38 = arith.mulf %36, %37 : vector<32x256xf32>
    %39 = vector.extract_strided_slice %1 {offsets = [1, 0], sizes = [1, 256], strides = [1, 1]} : vector<2x256xf32> to vector<1x256xf32>
    %40 = vector.broadcast %7 : vector<32x1xf32> to vector<32x256xf32>
    %41 = vector.broadcast %39 : vector<1x256xf32> to vector<32x256xf32>
    %42 = arith.mulf %40, %41 : vector<32x256xf32>
    %43 = arith.addf %38, %42 : vector<32x256xf32>
    %44 = vector.broadcast %35 : vector<32x1xf32> to vector<32x256xf32>
    %45 = arith.addf %43, %44 : vector<32x256xf32>
    %cst_14 = arith.constant 0.000000e+00 : f32
    %46 = vector.broadcast %cst_14 : f32 to vector<32x256xf32>
    %47 = arith.maximumf %45, %46 : vector<32x256xf32>
    %48 = tpu.concatenate %27, %47 in 0 : vector<32x256xf32>, vector<32x256xf32> -> vector<64x256xf32>
    %c0_15 = arith.constant 0 : index
    %c0_16 = arith.constant 0 : index
    %49 = vector.load %arg4[%c0_15, %c0_16] : memref<2x64xf32, #tpu.memory_space<vmem>>, vector<2x64xf32>
    %cst_17 = arith.constant dense<0.000000e+00> : vector<2x256xf32>
    %50 = tpu.matmul %49, %48, %cst_17 {dimension_numbers = #tpu.dot_dimension_numbers<[1], [0], [0], [1], [0, 0, 1, 1], [], []>, precision = #tpu.contract_precision<fp32>} : vector<2x64xf32>, vector<64x256xf32>, vector<2x256xf32> -> vector<2x256xf32>
    %51 = arith.subf %50, %5 : vector<2x256xf32>
    %52 = arith.mulf %51, %51 : vector<2x256xf32>
    %53 = vector.shape_cast %52 : vector<2x256xf32> to vector<1x2x256xf32>
    %cst_18 = arith.constant dense<0.000000e+00> : vector<1xf32>
    %54 = vector.multi_reduction <add>, %53, %cst_18 [1, 2] : vector<1x2x256xf32> to vector<1xf32>
    %55 = vector.shape_cast %54 : vector<1xf32> to vector<1x1x1xf32>
    %56 = vector.extract %55[0, 0, 0] : f32 from vector<1x1x1xf32>
    %c0_19 = arith.constant 0 : index
    %c0_20 = arith.constant 0 : index
    %57 = memref.load %arg5[%c0_19, %c0_20] : memref<1x1xf32, #tpu.memory_space<smem>>
    memref.store %56, %arg5[%c0_19, %c0_20] : memref<1x1xf32, #tpu.memory_space<smem>>
    return
  }
  func.func @transform_0(%arg0: i32) -> (i32, i32) {
    %c0_i32 = arith.constant 0 : i32
    %c0_i32_0 = arith.constant 0 : i32
    %c0_i32_1 = arith.constant 0 : i32
    return %c0_i32, %c0_i32_0 : i32, i32
  }
  func.func @transform_1(%arg0: i32) -> i32 {
    %c0_i32 = arith.constant 0 : i32
    %c0_i32_0 = arith.constant 0 : i32
    return %c0_i32 : i32
  }
  func.func @transform_2(%arg0: i32) -> (i32, i32) {
    %c0_i32 = arith.constant 0 : i32
    %c0_i32_0 = arith.constant 0 : i32
    %c0_i32_1 = arith.constant 0 : i32
    return %c0_i32, %c0_i32_0 : i32, i32
  }
  func.func @transform_3(%arg0: i32) -> (i32, i32) {
    %c0_i32 = arith.constant 0 : i32
    %c0_i32_0 = arith.constant 0 : i32
    %c0_i32_1 = arith.constant 0 : i32
    return %c0_i32, %c0_i32_0 : i32, i32
  }
  func.func @transform_4(%arg0: i32) -> (i32, i32) {
    %c0_i32 = arith.constant 0 : i32
    %c0_i32_0 = arith.constant 0 : i32
    %c0_i32_1 = arith.constant 0 : i32
    return %c0_i32, %c0_i32_0 : i32, i32
  }
}

</mosaic_0001>

<llo_original>
// kernel: tpu_custom_call.1
$region0: #{tpu_custom_call.1}
  #allocation0 [shape = 'u32[]', space=smem, size = 0x4, offset = 0x4, fixed_abs, tag = 'smem constant byte address 0x4 - core index']
  #allocation1 [shape = 'u32[72,128]{1,0:T(1,128)}', space=vmem, size = 0x9000, scoped, tag = 'internal scratch']
  %s0 = inlined_call_operand.vmem [shape: f32[4,256], index: 0, kind: input, shape index: {}]
  %s1 = inlined_call_operand.vmem [shape: f32[4], index: 1, kind: input, shape index: {}]
  %s2 = inlined_call_operand.vmem [shape: f32[32,4], index: 2, kind: input, shape index: {}]
  %s3 = inlined_call_operand.vmem [shape: f32[2,64], index: 3, kind: input, shape index: {}]
  %s4 = inlined_call_operand.hbm [shape: f32[1,1], index: 4, kind: output, shape index: {}]
  %s5 = sld [smem:[#allocation0]]
  $region30: #{tpu_custom_call.1} parent=0
    _
  %s7 = ssub.s32 1, %s5
  %s8 = scalar_select 0, %s7, %s5
  $region1: #{tpu_custom_call.1} parent=0
    #allocation2 [shape = 'u8[512]{0}', space=smem, size = 0x200, scoped, tag = 'input window, operand 1, single buffered']
    #allocation3 [shape = 's32[1]{0}', space=sflag, size = 0x4, scoped, tag = 'scoped memory for tpu_custom_call.1']
    #allocation4 [shape = 's32[1]{0}', space=sflag, size = 0x4, scoped, tag = 'scoped memory for tpu_custom_call.1']
    #allocation5 [shape = 'u8[512]{0}', space=smem, size = 0x200, scoped, tag = 'output window, operand 0, single buffered']
    %9 = vsyncpa [#allocation4], 0
    %10 = vsyncpa [#allocation3], 0
    // Predicated region
    $region2: #{tpu_custom_call.1} parent=1 // pred_check
      _
    $region3: #{tpu_custom_call.1} parent=1 // pred_check_branch
      %12 = sbr.rel (0) target = $region5
    $region4: #{tpu_custom_call.1} parent=1 // pred_region
      _
    $region5: #{tpu_custom_call.1} parent=1 // pred_fallthru
      _
    // Predicated region
    $region6: #{tpu_custom_call.1} parent=1 // pred_check
      _
    $region7: #{tpu_custom_call.1} parent=1 // pred_check_branch
      %14 = sbr.rel (0) target = $region9
    $region8: #{tpu_custom_call.1} parent=1 // pred_region
      %16 = vsyncadd [#allocation4], 0
      %s18 = sshll.u32 %s1, 4
      %s19 = int_to_ptr.vmem [resolvable:$true] %s18
      %21 = dma.vmem_to_smem %s19, 16, [#allocation2], [#allocation4]
    $region9: #{tpu_custom_call.1} parent=1 // pred_fallthru
      _
    // Predicated region
    $region10: #{tpu_custom_call.1} parent=1 // pred_check
      _
    $region11: #{tpu_custom_call.1} parent=1 // pred_check_branch
      %23 = sbr.rel (0) target = $region13
    $region12: #{tpu_custom_call.1} parent=1 // pred_region
      _
    $region13: #{tpu_custom_call.1} parent=1 // pred_fallthru
      _
    // Predicated region
    $region14: #{tpu_custom_call.1} parent=1 // pred_check
      _
    $region15: #{tpu_custom_call.1} parent=1 // pred_check_branch
      %25 = sbr.rel (0) target = $region17
    $region16: #{tpu_custom_call.1} parent=1 // pred_region
      _
    $region17: #{tpu_custom_call.1} parent=1 // pred_fallthru
      _
    // Predicated region
    $region18: #{tpu_custom_call.1} parent=1 // pred_check
      _
    $region19: #{tpu_custom_call.1} parent=1 // pred_check_branch
      %27 = sbr.rel (0) target = $region21
    $region20: #{tpu_custom_call.1} parent=1 // pred_region
      %29 = dma.done [#allocation4], 16
    $region21: #{tpu_custom_call.1} parent=1 // pred_fallthru
      _
    %30 = sfence
    %v31 = vld [vmem:[%s0] sm:$0x33]
    %v32 = vld [vmem:[%s0] sm:$0xcc]
    %v33 = vsub.f32 %v31, 0.5
    %v34 = vmul.f32 %v33, 2.0
    %v35 = vld [vmem:[%s2] sm:$0xff]
    %v36 = vld [vmem:[%s2 + $0x8] sm:$0xff]
    %v37 = vld [vmem:[%s2 + $0x10] sm:$0xff]
    %v38 = vld [vmem:[%s2 + $0x18] sm:$0xff]
    %s39 = sld [smem:[#allocation2]]
    %s40 = sld [smem:[#allocation2 + $0x1]]
    %v41 = vstv %s39
    %v42 = vmul.f32 %v41, %v31
    %v43 = vstv %s40
    %v44 = vadd.f32 %v42, %v43
    %46 = vset.pattern.permute.xlu0 0
    %47 = vperm.xlu0 %46, %v35
    %v48 = vpop.permute.xlu0 %47
    %51 = vset.pattern.permute.xlu0 0
    %52 = vperm.xlu0 %51, %v36
    %v53 = vpop.permute.xlu0 %52
    %56 = vset.pattern.permute.xlu0 0
    %57 = vperm.xlu0 %56, %v37
    %v58 = vpop.permute.xlu0 %57
    %61 = vset.pattern.permute.xlu0 0
    %62 = vperm.xlu0 %61, %v38
    %v63 = vpop.permute.xlu0 %62
    %v66 = vperm.slane %v44, 0
    %v67 = vperm.slane %v44, 4
    %v70 = vperm.slane %v66, 0
    %v71 = vperm.slane %v67, 0
    %v72 = vmul.f32 %v48, %v70
    %v73 = vmul.f32 %v48, %v71
    %v74 = vmul.f32 %v53, %v70
    %v75 = vmul.f32 %v53, %v71
    %v76 = vmul.f32 %v58, %v70
    %v77 = vmul.f32 %v58, %v71
    %v78 = vmul.f32 %v63, %v70
    %v79 = vmul.f32 %v63, %v71
    %80 = vset.pattern.permute.xlu0 1
    %81 = vperm.xlu0 %80, %v35
    %v82 = vpop.permute.xlu0 %81
    %84 = vset.pattern.permute.xlu0 1
    %85 = vperm.xlu0 %84, %v36
    %v86 = vpop.permute.xlu0 %85
    %88 = vset.pattern.permute.xlu0 1
    %89 = vperm.xlu0 %88, %v37
    %v90 = vpop.permute.xlu0 %89
    %92 = vset.pattern.permute.xlu0 1
    %93 = vperm.xlu0 %92, %v38
    %v94 = vpop.permute.xlu0 %93
    %v97 = vperm.slane %v32, 2
    %v98 = vperm.slane %v32, 6
    %v101 = vperm.slane %v97, 2
    %v102 = vperm.slane %v98, 2
    %v103 = vmul.f32 %v82, %v101
    %v104 = vmul.f32 %v82, %v102
    %v105 = vmul.f32 %v86, %v101
    %v106 = vmul.f32 %v86, %v102
    %v107 = vmul.f32 %v90, %v101
    %v108 = vmul.f32 %v90, %v102
    %v109 = vmul.f32 %v94, %v101
    %v110 = vmul.f32 %v94, %v102
    %v111 = vadd.f32 %v72, %v103
    %v112 = vadd.f32 %v73, %v104
    %v113 = vadd.f32 %v74, %v105
    %v114 = vadd.f32 %v75, %v106
    %v115 = vadd.f32 %v76, %v107
    %v116 = vadd.f32 %v77, %v108
    %v117 = vadd.f32 %v78, %v109
    %v118 = vadd.f32 %v79, %v110
    %119 = vset.pattern.permute.xlu0 2
    %120 = vperm.xlu0 %119, %v35
    %v121 = vpop.permute.xlu0 %120
    %123 = vset.pattern.permute.xlu0 2
    %124 = vperm.xlu0 %123, %v36
    %v125 = vpop.permute.xlu0 %124
    %127 = vset.pattern.permute.xlu0 2
    %128 = vperm.xlu0 %127, %v37
    %v129 = vpop.permute.xlu0 %128
    %131 = vset.pattern.permute.xlu0 2
    %132 = vperm.xlu0 %131, %v38
    %v133 = vpop.permute.xlu0 %132
    %v135 = vadd.f32 %v111, %v121
    %v136 = vadd.f32 %v112, %v121
    %v137 = vadd.f32 %v113, %v125
    %v138 = vadd.f32 %v114, %v125
    %v139 = vadd.f32 %v115, %v129
    %v140 = vadd.f32 %v116, %v129
    %v141 = vadd.f32 %v117, %v133
    %v142 = vadd.f32 %v118, %v133
    %v143 = vmax.f32 %v135, 0.0
    %v144 = vmax.f32 %v136, 0.0
    %v145 = vmax.f32 %v137, 0.0
    %v146 = vmax.f32 %v138, 0.0
    %v147 = vmax.f32 %v139, 0.0
    %v148 = vmax.f32 %v140, 0.0
    %v149 = vmax.f32 %v141, 0.0
    %v150 = vmax.f32 %v142, 0.0
    %s151 = sld [smem:[#allocation2 + $0x2]]
    %s152 = sld [smem:[#allocation2 + $0x3]]
    %v153 = vstv %s151
    %v154 = vmul.f32 %v153, %v31
    %v155 = vstv %s152
    %v156 = vadd.f32 %v154, %v155
    %v158 = vperm.slane %v156, 1
    %v159 = vperm.slane %v156, 5
    %v162 = vperm.slane %v158, 1
    %v163 = vperm.slane %v159, 1
    %v164 = vmul.f32 %v48, %v162
    %v165 = vmul.f32 %v48, %v163
    %v166 = vmul.f32 %v53, %v162
    %v167 = vmul.f32 %v53, %v163
    %v168 = vmul.f32 %v58, %v162
    %v169 = vmul.f32 %v58, %v163
    %v170 = vmul.f32 %v63, %v162
    %v171 = vmul.f32 %v63, %v163
    %v172 = vperm.slane %v32, 3
    %v173 = vperm.slane %v32, 7
    %v176 = vperm.slane %v172, 3
    %v177 = vperm.slane %v173, 3
    %v178 = vmul.f32 %v82, %v176
    %v179 = vmul.f32 %v82, %v177
    %v180 = vmul.f32 %v86, %v176
    %v181 = vmul.f32 %v86, %v177
    %v182 = vmul.f32 %v90, %v176
    %v183 = vmul.f32 %v90, %v177
    %v184 = vmul.f32 %v94, %v176
    %v185 = vmul.f32 %v94, %v177
    %v186 = vadd.f32 %v164, %v178
    %v187 = vadd.f32 %v165, %v179
    %v188 = vadd.f32 %v166, %v180
    %v189 = vadd.f32 %v167, %v181
    %v190 = vadd.f32 %v168, %v182
    %v191 = vadd.f32 %v169, %v183
    %v192 = vadd.f32 %v170, %v184
    %v193 = vadd.f32 %v171, %v185
    %194 = vset.pattern.permute.xlu0 3
    %195 = vperm.xlu0 %194, %v35
    %v196 = vpop.permute.xlu0 %195
    %198 = vset.pattern.permute.xlu0 3
    %199 = vperm.xlu0 %198, %v36
    %v200 = vpop.permute.xlu0 %199
    %202 = vset.pattern.permute.xlu0 3
    %203 = vperm.xlu0 %202, %v37
    %v204 = vpop.permute.xlu0 %203
    %206 = vset.pattern.permute.xlu0 3
    %207 = vperm.xlu0 %206, %v38
    %v208 = vpop.permute.xlu0 %207
    %v210 = vadd.f32 %v186, %v196
    %v211 = vadd.f32 %v187, %v196
    %v212 = vadd.f32 %v188, %v200
    %v213 = vadd.f32 %v189, %v200
    %v214 = vadd.f32 %v190, %v204
    %v215 = vadd.f32 %v191, %v204
    %v216 = vadd.f32 %v192, %v208
    %v217 = vadd.f32 %v193, %v208
    %v218 = vmax.f32 %v210, 0.0
    %v219 = vmax.f32 %v211, 0.0
    %v220 = vmax.f32 %v212, 0.0
    %v221 = vmax.f32 %v213, 0.0
    %v222 = vmax.f32 %v214, 0.0
    %v223 = vmax.f32 %v215, 0.0
    %v224 = vmax.f32 %v216, 0.0
    %v225 = vmax.f32 %v217, 0.0
    %v226 = vld [vmem:[%s3] sm:$0x3]
    %vm227 = vcmask 523264
    %v229 = vsel %vm227, %v226, 0
    %231 = vmatpush.msra.mxu0 0.0
    %232 = vmatpush.msra.mxu0 0.0
    %233 = vmatpush.msra.mxu0 0.0
    %234 = vmatpush.msra.mxu0 0.0
    %235 = vmatpush.msra.mxu0 0.0
    %236 = vmatpush.msra.mxu0 0.0
    %237 = vmatpush.msra.mxu0 0.0
    %238 = vmatpush.msra.mxu0 0.0
    %v239 = vand.u32 %v224, 4294901760
    %240 = vmatpush.msra.mxu0 %v239
    %v241 = vand.u32 %v222, 4294901760
    %242 = vmatpush.msra.mxu0 %v241
    %v243 = vand.u32 %v220, 4294901760
    %244 = vmatpush.msra.mxu0 %v243
    %v245 = vand.u32 %v218, 4294901760
    %246 = vmatpush.msra.mxu0 %v245
    %v247 = vand.u32 %v149, 4294901760
    %248 = vmatpush.msra.mxu0 %v247
    %v249 = vand.u32 %v147, 4294901760
    %250 = vmatpush.msra.mxu0 %v249
    %v251 = vand.u32 %v145, 4294901760
    %252 = vmatpush.msra.mxu0 %v251
    %v253 = vand.u32 %v143, 4294901760
    %254 = vmatpush.msra.mxu0 %v253
    %v255 = vand.u32 %v229, 4294901760
    %v256 = vsub.f32 %v229, %v255
    %v257 = vand.u32 %v256, 4294901760
    %v258 = vsub.f32 %v256, %v257
    %v259 = vand.u32 %v258, 4294901760
    %260 = vmatmul.f32.gmra.mxu0 %v259
    %v261 = vpop.f32.mrf.mxu0
    %v262 = vadd.f32 0.0, %v261
    %263 = vdwg.mxu0
    %264 = vmatpush.msra.mxu0 0.0
    %265 = vmatpush.msra.mxu0 0.0
    %266 = vmatpush.msra.mxu0 0.0
    %267 = vmatpush.msra.mxu0 0.0
    %268 = vmatpush.msra.mxu0 0.0
    %269 = vmatpush.msra.mxu0 0.0
    %270 = vmatpush.msra.mxu0 0.0
    %271 = vmatpush.msra.mxu0 0.0
    %v272 = vand.u32 %v224, 4294901760
    %v273 = vsub.f32 %v224, %v272
    %v274 = vand.u32 %v273, 4294901760
    %v275 = vsub.f32 %v273, %v274
    %v276 = vand.u32 %v275, 4294901760
    %277 = vmatpush.msra.mxu0 %v276
    %v278 = vand.u32 %v222, 4294901760
    %v279 = vsub.f32 %v222, %v278
    %v280 = vand.u32 %v279, 4294901760
    %v281 = vsub.f32 %v279, %v280
    %v282 = vand.u32 %v281, 4294901760
    %283 = vmatpush.msra.mxu0 %v282
    %v284 = vand.u32 %v220, 4294901760
    %v285 = vsub.f32 %v220, %v284
    %v286 = vand.u32 %v285, 4294901760
    %v287 = vsub.f32 %v285, %v286
    %v288 = vand.u32 %v287, 4294901760
    %289 = vmatpush.msra.mxu0 %v288
    %v290 = vand.u32 %v218, 4294901760
    %v291 = vsub.f32 %v218, %v290
    %v292 = vand.u32 %v291, 4294901760
    %v293 = vsub.f32 %v291, %v292
    %v294 = vand.u32 %v293, 4294901760
    %295 = vmatpush.msra.mxu0 %v294
    %v296 = vand.u32 %v149, 4294901760
    %v297 = vsub.f32 %v149, %v296
    %v298 = vand.u32 %v297, 4294901760
    %v299 = vsub.f32 %v297, %v298
    %v300 = vand.u32 %v299, 4294901760
    %301 = vmatpush.msra.mxu0 %v300
    %v302 = vand.u32 %v147, 4294901760
    %v303 = vsub.f32 %v147, %v302
    %v304 = vand.u32 %v303, 4294901760
    %v305 = vsub.f32 %v303, %v304
    %v306 = vand.u32 %v305, 4294901760
    %307 = vmatpush.msra.mxu0 %v306
    %v308 = vand.u32 %v145, 4294901760
    %v309 = vsub.f32 %v145, %v308
    %v310 = vand.u32 %v309, 4294901760
    %v311 = vsub.f32 %v309, %v310
    %v312 = vand.u32 %v311, 4294901760
    %313 = vmatpush.msra.mxu0 %v312
    %v314 = vand.u32 %v143, 4294901760
    %v315 = vsub.f32 %v143, %v314
    %v316 = vand.u32 %v315, 4294901760
    %v317 = vsub.f32 %v315, %v316
    %v318 = vand.u32 %v317, 4294901760
    %319 = vmatpush.msra.mxu0 %v318
    %v320 = vand.u32 %v229, 4294901760
    %321 = vmatmul.f32.gmra.mxu0 %v320
    %v322 = vpop.f32.mrf.mxu0
    %v323 = vadd.f32 %v262, %v322
    %324 = vdwg.mxu0
    %325 = vmatpush.msra.mxu0 0.0
    %326 = vmatpush.msra.mxu0 0.0
    %327 = vmatpush.msra.mxu0 0.0
    %328 = vmatpush.msra.mxu0 0.0
    %329 = vmatpush.msra.mxu0 0.0
    %330 = vmatpush.msra.mxu0 0.0
    %331 = vmatpush.msra.mxu0 0.0
    %332 = vmatpush.msra.mxu0 0.0
    %v333 = vand.u32 %v224, 4294901760
    %v334 = vsub.f32 %v224, %v333
    %335 = vmatpush.msra.mxu0 %v334
    %v336 = vand.u32 %v222, 4294901760
    %v337 = vsub.f32 %v222, %v336
    %338 = vmatpush.msra.mxu0 %v337
    %v339 = vand.u32 %v220, 4294901760
    %v340 = vsub.f32 %v220, %v339
    %341 = vmatpush.msra.mxu0 %v340
    %v342 = vand.u32 %v218, 4294901760
    %v343 = vsub.f32 %v218, %v342
    %344 = vmatpush.msra.mxu0 %v343
    %v345 = vand.u32 %v149, 4294901760
    %v346 = vsub.f32 %v149, %v345
    %347 = vmatpush.msra.mxu0 %v346
    %v348 = vand.u32 %v147, 4294901760
    %v349 = vsub.f32 %v147, %v348
    %350 = vmatpush.msra.mxu0 %v349
    %v351 = vand.u32 %v145, 4294901760
    %v352 = vsub.f32 %v145, %v351
    %353 = vmatpush.msra.mxu0 %v352
    %v354 = vand.u32 %v143, 4294901760
    %v355 = vsub.f32 %v143, %v354
    %356 = vmatpush.msra.mxu0 %v355
    %v357 = vand.u32 %v229, 4294901760
    %v358 = vsub.f32 %v229, %v357
    %359 = vmatmul.f32.gmra.mxu0 %v358
    %v360 = vpop.f32.mrf.mxu0
    %v361 = vadd.f32 %v323, %v360
    %362 = vdwg.mxu0
    %363 = vmatpush.msra.mxu0 0.0
    %364 = vmatpush.msra.mxu0 0.0
    %365 = vmatpush.msra.mxu0 0.0
    %366 = vmatpush.msra.mxu0 0.0
    %367 = vmatpush.msra.mxu0 0.0
    %368 = vmatpush.msra.mxu0 0.0
    %369 = vmatpush.msra.mxu0 0.0
    %370 = vmatpush.msra.mxu0 0.0
    %v371 = vand.u32 %v224, 4294901760
    %372 = vmatpush.msra.mxu0 %v371
    %v373 = vand.u32 %v222, 4294901760
    %374 = vmatpush.msra.mxu0 %v373
    %v375 = vand.u32 %v220, 4294901760
    %376 = vmatpush.msra.mxu0 %v375
    %v377 = vand.u32 %v218, 4294901760
    %378 = vmatpush.msra.mxu0 %v377
    %v379 = vand.u32 %v149, 4294901760
    %380 = vmatpush.msra.mxu0 %v379
    %v381 = vand.u32 %v147, 4294901760
    %382 = vmatpush.msra.mxu0 %v381
    %v383 = vand.u32 %v145, 4294901760
    %384 = vmatpush.msra.mxu0 %v383
    %v385 = vand.u32 %v143, 4294901760
    %386 = vmatpush.msra.mxu0 %v385
    %v387 = vand.u32 %v229, 4294901760
    %v388 = vsub.f32 %v229, %v387
    %v389 = vand.u32 %v388, 4294901760
    %390 = vmatmul.f32.gmra.mxu0 %v389
    %v391 = vpop.f32.mrf.mxu0
    %v392 = vadd.f32 %v361, %v391
    %393 = vdwg.mxu0
    %394 = vmatpush.msra.mxu0 0.0
    %395 = vmatpush.msra.mxu0 0.0
    %396 = vmatpush.msra.mxu0 0.0
    %397 = vmatpush.msra.mxu0 0.0
    %398 = vmatpush.msra.mxu0 0.0
    %399 = vmatpush.msra.mxu0 0.0
    %400 = vmatpush.msra.mxu0 0.0
    %401 = vmatpush.msra.mxu0 0.0
    %v402 = vand.u32 %v224, 4294901760
    %v403 = vsub.f32 %v224, %v402
    %v404 = vand.u32 %v403, 4294901760
    %405 = vmatpush.msra.mxu0 %v404
    %v406 = vand.u32 %v222, 4294901760
    %v407 = vsub.f32 %v222, %v406
    %v408 = vand.u32 %v407, 4294901760
    %409 = vmatpush.msra.mxu0 %v408
    %v410 = vand.u32 %v220, 4294901760
    %v411 = vsub.f32 %v220, %v410
    %v412 = vand.u32 %v411, 4294901760
    %413 = vmatpush.msra.mxu0 %v412
    %v414 = vand.u32 %v218, 4294901760
    %v415 = vsub.f32 %v218, %v414
    %v416 = vand.u32 %v415, 4294901760
    %417 = vmatpush.msra.mxu0 %v416
    %v418 = vand.u32 %v149, 4294901760
    %v419 = vsub.f32 %v149, %v418
    %v420 = vand.u32 %v419, 4294901760
    %421 = vmatpush.msra.mxu0 %v420
    %v422 = vand.u32 %v147, 4294901760
    %v423 = vsub.f32 %v147, %v422
    %v424 = vand.u32 %v423, 4294901760
    %425 = vmatpush.msra.mxu0 %v424
    %v426 = vand.u32 %v145, 4294901760
    %v427 = vsub.f32 %v145, %v426
    %v428 = vand.u32 %v427, 4294901760
    %429 = vmatpush.msra.mxu0 %v428
    %v430 = vand.u32 %v143, 4294901760
    %v431 = vsub.f32 %v143, %v430
    %v432 = vand.u32 %v431, 4294901760
    %433 = vmatpush.msra.mxu0 %v432
    %v434 = vand.u32 %v229, 4294901760
    %435 = vmatmul.f32.gmra.mxu0 %v434
    %v436 = vpop.f32.mrf.mxu0
    %v437 = vadd.f32 %v392, %v436
    %438 = vdwg.mxu0
    %439 = vmatpush.msra.mxu0 0.0
    %440 = vmatpush.msra.mxu0 0.0
    %441 = vmatpush.msra.mxu0 0.0
    %442 = vmatpush.msra.mxu0 0.0
    %443 = vmatpush.msra.mxu0 0.0
    %444 = vmatpush.msra.mxu0 0.0
    %445 = vmatpush.msra.mxu0 0.0
    %446 = vmatpush.msra.mxu0 0.0
    %v447 = vand.u32 %v224, 4294901760
    %448 = vmatpush.msra.mxu0 %v447
    %v449 = vand.u32 %v222, 4294901760
    %450 = vmatpush.msra.mxu0 %v449
    %v451 = vand.u32 %v220, 4294901760
    %452 = vmatpush.msra.mxu0 %v451
    %v453 = vand.u32 %v218, 4294901760
    %454 = vmatpush.msra.mxu0 %v453
    %v455 = vand.u32 %v149, 4294901760
    %456 = vmatpush.msra.mxu0 %v455
    %v457 = vand.u32 %v147, 4294901760
    %458 = vmatpush.msra.mxu0 %v457
    %v459 = vand.u32 %v145, 4294901760
    %460 = vmatpush.msra.mxu0 %v459
    %v461 = vand.u32 %v143, 4294901760
    %462 = vmatpush.msra.mxu0 %v461
    %v463 = vand.u32 %v229, 4294901760
    %464 = vmatmul.f32.gmra.mxu0 %v463
    %v465 = vpop.f32.mrf.mxu0
    %v466 = vadd.f32 %v437, %v465
    %467 = vdwg.mxu0
    %468 = vmatpush.msra.mxu0 0.0
    %469 = vmatpush.msra.mxu0 0.0
    %470 = vmatpush.msra.mxu0 0.0
    %471 = vmatpush.msra.mxu0 0.0
    %472 = vmatpush.msra.mxu0 0.0
    %473 = vmatpush.msra.mxu0 0.0
    %474 = vmatpush.msra.mxu0 0.0
    %475 = vmatpush.msra.mxu0 0.0
    %v476 = vand.u32 %v225, 4294901760
    %477 = vmatpush.msra.mxu0 %v476
    %v478 = vand.u32 %v223, 4294901760
    %479 = vmatpush.msra.mxu0 %v478
    %v480 = vand.u32 %v221, 4294901760
    %481 = vmatpush.msra.mxu0 %v480
    %v482 = vand.u32 %v219, 4294901760
    %483 = vmatpush.msra.mxu0 %v482
    %v484 = vand.u32 %v150, 4294901760
    %485 = vmatpush.msra.mxu0 %v484
    %v486 = vand.u32 %v148, 4294901760
    %487 = vmatpush.msra.mxu0 %v486
    %v488 = vand.u32 %v146, 4294901760
    %489 = vmatpush.msra.mxu0 %v488
    %v490 = vand.u32 %v144, 4294901760
    %491 = vmatpush.msra.mxu0 %v490
    %v492 = vand.u32 %v229, 4294901760
    %v493 = vsub.f32 %v229, %v492
    %v494 = vand.u32 %v493, 4294901760
    %v495 = vsub.f32 %v493, %v494
    %v496 = vand.u32 %v495, 4294901760
    %497 = vmatmul.f32.gmra.mxu0 %v496
    %v498 = vpop.f32.mrf.mxu0
    %v499 = vadd.f32 0.0, %v498
    %500 = vdwg.mxu0
    %501 = vmatpush.msra.mxu0 0.0
    %502 = vmatpush.msra.mxu0 0.0
    %503 = vmatpush.msra.mxu0 0.0
    %504 = vmatpush.msra.mxu0 0.0
    %505 = vmatpush.msra.mxu0 0.0
    %506 = vmatpush.msra.mxu0 0.0
    %507 = vmatpush.msra.mxu0 0.0
    %508 = vmatpush.msra.mxu0 0.0
    %v509 = vand.u32 %v225, 4294901760
    %v510 = vsub.f32 %v225, %v509
    %v511 = vand.u32 %v510, 4294901760
    %v512 = vsub.f32 %v510, %v511
    %v513 = vand.u32 %v512, 4294901760
    %514 = vmatpush.msra.mxu0 %v513
    %v515 = vand.u32 %v223, 4294901760
    %v516 = vsub.f32 %v223, %v515
    %v517 = vand.u32 %v516, 4294901760
    %v518 = vsub.f32 %v516, %v517
    %v519 = vand.u32 %v518, 4294901760
    %520 = vmatpush.msra.mxu0 %v519
    %v521 = vand.u32 %v221, 4294901760
    %v522 = vsub.f32 %v221, %v521
    %v523 = vand.u32 %v522, 4294901760
    %v524 = vsub.f32 %v522, %v523
    %v525 = vand.u32 %v524, 4294901760
    %526 = vmatpush.msra.mxu0 %v525
    %v527 = vand.u32 %v219, 4294901760
    %v528 = vsub.f32 %v219, %v527
    %v529 = vand.u32 %v528, 4294901760
    %v530 = vsub.f32 %v528, %v529
    %v531 = vand.u32 %v530, 4294901760
    %532 = vmatpush.msra.mxu0 %v531
    %v533 = vand.u32 %v150, 4294901760
    %v534 = vsub.f32 %v150, %v533
    %v535 = vand.u32 %v534, 4294901760
    %v536 = vsub.f32 %v534, %v535
    %v537 = vand.u32 %v536, 4294901760
    %538 = vmatpush.msra.mxu0 %v537
    %v539 = vand.u32 %v148, 4294901760
    %v540 = vsub.f32 %v148, %v539
    %v541 = vand.u32 %v540, 4294901760
    %v542 = vsub.f32 %v540, %v541
    %v543 = vand.u32 %v542, 4294901760
    %544 = vmatpush.msra.mxu0 %v543
    %v545 = vand.u32 %v146, 4294901760
    %v546 = vsub.f32 %v146, %v545
    %v547 = vand.u32 %v546, 4294901760
    %v548 = vsub.f32 %v546, %v547
    %v549 = vand.u32 %v548, 4294901760
    %550 = vmatpush.msra.mxu0 %v549
    %v551 = vand.u32 %v144, 4294901760
    %v552 = vsub.f32 %v144, %v551
    %v553 = vand.u32 %v552, 4294901760
    %v554 = vsub.f32 %v552, %v553
    %v555 = vand.u32 %v554, 4294901760
    %556 = vmatpush.msra.mxu0 %v555
    %v557 = vand.u32 %v229, 4294901760
    %558 = vmatmul.f32.gmra.mxu0 %v557
    %v559 = vpop.f32.mrf.mxu0
    %v560 = vadd.f32 %v499, %v559
    %561 = vdwg.mxu0
    %562 = vmatpush.msra.mxu0 0.0
    %563 = vmatpush.msra.mxu0 0.0
    %564 = vmatpush.msra.mxu0 0.0
    %565 = vmatpush.msra.mxu0 0.0
    %566 = vmatpush.msra.mxu0 0.0
    %567 = vmatpush.msra.mxu0 0.0
    %568 = vmatpush.msra.mxu0 0.0
    %569 = vmatpush.msra.mxu0 0.0
    %v570 = vand.u32 %v225, 4294901760
    %v571 = vsub.f32 %v225, %v570
    %572 = vmatpush.msra.mxu0 %v571
    %v573 = vand.u32 %v223, 4294901760
    %v574 = vsub.f32 %v223, %v573
    %575 = vmatpush.msra.mxu0 %v574
    %v576 = vand.u32 %v221, 4294901760
    %v577 = vsub.f32 %v221, %v576
    %578 = vmatpush.msra.mxu0 %v577
    %v579 = vand.u32 %v219, 4294901760
    %v580 = vsub.f32 %v219, %v579
    %581 = vmatpush.msra.mxu0 %v580
    %v582 = vand.u32 %v150, 4294901760
    %v583 = vsub.f32 %v150, %v582
    %584 = vmatpush.msra.mxu0 %v583
    %v585 = vand.u32 %v148, 4294901760
    %v586 = vsub.f32 %v148, %v585
    %587 = vmatpush.msra.mxu0 %v586
    %v588 = vand.u32 %v146, 4294901760
    %v589 = vsub.f32 %v146, %v588
    %590 = vmatpush.msra.mxu0 %v589
    %v591 = vand.u32 %v144, 4294901760
    %v592 = vsub.f32 %v144, %v591
    %593 = vmatpush.msra.mxu0 %v592
    %v594 = vand.u32 %v229, 4294901760
    %v595 = vsub.f32 %v229, %v594
    %596 = vmatmul.f32.gmra.mxu0 %v595
    %v597 = vpop.f32.mrf.mxu0
    %v598 = vadd.f32 %v560, %v597
    %599 = vdwg.mxu0
    %600 = vmatpush.msra.mxu0 0.0
    %601 = vmatpush.msra.mxu0 0.0
    %602 = vmatpush.msra.mxu0 0.0
    %603 = vmatpush.msra.mxu0 0.0
    %604 = vmatpush.msra.mxu0 0.0
    %605 = vmatpush.msra.mxu0 0.0
    %606 = vmatpush.msra.mxu0 0.0
    %607 = vmatpush.msra.mxu0 0.0
    %v608 = vand.u32 %v225, 4294901760
    %609 = vmatpush.msra.mxu0 %v608
    %v610 = vand.u32 %v223, 4294901760
    %611 = vmatpush.msra.mxu0 %v610
    %v612 = vand.u32 %v221, 4294901760
    %613 = vmatpush.msra.mxu0 %v612
    %v614 = vand.u32 %v219, 4294901760
    %615 = vmatpush.msra.mxu0 %v614
    %v616 = vand.u32 %v150, 4294901760
    %617 = vmatpush.msra.mxu0 %v616
    %v618 = vand.u32 %v148, 4294901760
    %619 = vmatpush.msra.mxu0 %v618
    %v620 = vand.u32 %v146, 4294901760
    %621 = vmatpush.msra.mxu0 %v620
    %v622 = vand.u32 %v144, 4294901760
    %623 = vmatpush.msra.mxu0 %v622
    %v624 = vand.u32 %v229, 4294901760
    %v625 = vsub.f32 %v229, %v624
    %v626 = vand.u32 %v625, 4294901760
    %627 = vmatmul.f32.gmra.mxu0 %v626
    %v628 = vpop.f32.mrf.mxu0
    %v629 = vadd.f32 %v598, %v628
    %630 = vdwg.mxu0
    %631 = vmatpush.msra.mxu0 0.0
    %632 = vmatpush.msra.mxu0 0.0
    %633 = vmatpush.msra.mxu0 0.0
    %634 = vmatpush.msra.mxu0 0.0
    %635 = vmatpush.msra.mxu0 0.0
    %636 = vmatpush.msra.mxu0 0.0
    %637 = vmatpush.msra.mxu0 0.0
    %638 = vmatpush.msra.mxu0 0.0
    %v639 = vand.u32 %v225, 4294901760
    %v640 = vsub.f32 %v225, %v639
    %v641 = vand.u32 %v640, 4294901760
    %642 = vmatpush.msra.mxu0 %v641
    %v643 = vand.u32 %v223, 4294901760
    %v644 = vsub.f32 %v223, %v643
    %v645 = vand.u32 %v644, 4294901760
    %646 = vmatpush.msra.mxu0 %v645
    %v647 = vand.u32 %v221, 4294901760
    %v648 = vsub.f32 %v221, %v647
    %v649 = vand.u32 %v648, 4294901760
    %650 = vmatpush.msra.mxu0 %v649
    %v651 = vand.u32 %v219, 4294901760
    %v652 = vsub.f32 %v219, %v651
    %v653 = vand.u32 %v652, 4294901760
    %654 = vmatpush.msra.mxu0 %v653
    %v655 = vand.u32 %v150, 4294901760
    %v656 = vsub.f32 %v150, %v655
    %v657 = vand.u32 %v656, 4294901760
    %658 = vmatpush.msra.mxu0 %v657
    %v659 = vand.u32 %v148, 4294901760
    %v660 = vsub.f32 %v148, %v659
    %v661 = vand.u32 %v660, 4294901760
    %662 = vmatpush.msra.mxu0 %v661
    %v663 = vand.u32 %v146, 4294901760
    %v664 = vsub.f32 %v146, %v663
    %v665 = vand.u32 %v664, 4294901760
    %666 = vmatpush.msra.mxu0 %v665
    %v667 = vand.u32 %v144, 4294901760
    %v668 = vsub.f32 %v144, %v667
    %v669 = vand.u32 %v668, 4294901760
    %670 = vmatpush.msra.mxu0 %v669
    %v671 = vand.u32 %v229, 4294901760
    %672 = vmatmul.f32.gmra.mxu0 %v671
    %v673 = vpop.f32.mrf.mxu0
    %v674 = vadd.f32 %v629, %v673
    %675 = vdwg.mxu0
    %676 = vmatpush.msra.mxu0 0.0
    %677 = vmatpush.msra.mxu0 0.0
    %678 = vmatpush.msra.mxu0 0.0
    %679 = vmatpush.msra.mxu0 0.0
    %680 = vmatpush.msra.mxu0 0.0
    %681 = vmatpush.msra.mxu0 0.0
    %682 = vmatpush.msra.mxu0 0.0
    %683 = vmatpush.msra.mxu0 0.0
    %v684 = vand.u32 %v225, 4294901760
    %685 = vmatpush.msra.mxu0 %v684
    %v686 = vand.u32 %v223, 4294901760
    %687 = vmatpush.msra.mxu0 %v686
    %v688 = vand.u32 %v221, 4294901760
    %689 = vmatpush.msra.mxu0 %v688
    %v690 = vand.u32 %v219, 4294901760
    %691 = vmatpush.msra.mxu0 %v690
    %v692 = vand.u32 %v150, 4294901760
    %693 = vmatpush.msra.mxu0 %v692
    %v694 = vand.u32 %v148, 4294901760
    %695 = vmatpush.msra.mxu0 %v694
    %v696 = vand.u32 %v146, 4294901760
    %697 = vmatpush.msra.mxu0 %v696
    %v698 = vand.u32 %v144, 4294901760
    %699 = vmatpush.msra.mxu0 %v698
    %v700 = vand.u32 %v229, 4294901760
    %701 = vmatmul.f32.gmra.mxu0 %v700
    %v702 = vpop.f32.mrf.mxu0
    %v703 = vadd.f32 %v674, %v702
    %704 = vdwg.mxu0
    %706 = vst [vmem:[#allocation1] ss:$2 sm:$0xff] %v34
    %v707 = vld.sshfl [vmem:[#allocation1] sm:$0xff pattern:$0x75316420]
    %v708 = vld.sshfl [vmem:[#allocation1 + $0x8] sm:$0xff pattern:$0x75316420]
    %v711 = vsub.f32 %v466, %v707
    %v712 = vsub.f32 %v703, %v708
    %v713 = vmul.f32 %v711, %v711
    %v714 = vmul.f32 %v712, %v712
    %vm715 = vcmask 1041408
    %v716 = vsel %vm715, %v713, 0.0
    %v717 = vsel %vm715, %v714, 0.0
    %v718 = vadd.f32 %v716, %v717
    %719 = vadd.xlane.f32.xlu0 %v718
    %v720 = vpop.xlane.xlu0 %719
    %v721 = vrot.slane %v720, 4
    %v722 = vadd.f32 %v720, %v721
    %v723 = vrot.slane %v722, 2
    %v724 = vadd.f32 %v722, %v723
    %v725 = vrot.slane %v724, 1
    %v726 = vadd.f32 %v724, %v725
    %s727 = vtos %v726
    %s728 = scalar_lea.smem [#allocation5], 0
    %729 = sst [smem:[%s728]] %s727
    // Predicated region
    $region22: #{tpu_custom_call.1} parent=1 // pred_check
      _
    $region23: #{tpu_custom_call.1} parent=1 // pred_check_branch
      %731 = sbr.rel (0) target = $region25
    $region24: #{tpu_custom_call.1} parent=1 // pred_region
      %733 = vsyncadd [#allocation3], 0
      %s735 = sshll.u32 %s4, 4
      %s736 = int_to_ptr.hbm [resolvable:$true] %s735
      %738 = dma.smem_to_hbm [#allocation5], 16, %s736, [#allocation3]
    $region25: #{tpu_custom_call.1} parent=1 // pred_fallthru
      _
    // Predicated region
    $region26: #{tpu_custom_call.1} parent=1 // pred_check
      _
    $region27: #{tpu_custom_call.1} parent=1 // pred_check_branch
      %740 = sbr.rel (0) target = $region29
    $region28: #{tpu_custom_call.1} parent=1 // pred_region
      %742 = dma.done [#allocation3], 16
    $region29: #{tpu_custom_call.1} parent=1 // pred_fallthru
      _
    %743 = sfence
    %744 = vsyncpa [#allocation3], 1
    %745 = vsyncpa [#allocation4], 1

</llo_original>
